<compile_context>
chip_gen: v7x
topology: tpu7x:2x2x1
jax: 0.10.0
libtpu: 0.0.40
codegen_flags: <defaults>
</compile_context>

<pallas_src>
import functools

import numpy as np

import jax
import jax.numpy as jnp
from jax.experimental import pallas as pl
from jax.experimental.pallas import tpu as pltpu


# ----------------------------------------------------------------------------
# Small helpers
# ----------------------------------------------------------------------------
def _round_up(x, m):
    return ((x + m - 1) // m) * m


def _sublane_multiple(dtype):
    # 8 sublanes of 32-bit; packed dtypes need proportionally more rows.
    return 8 * (4 // jnp.dtype(dtype).itemsize)


def _row_tile(rows, lanes, itemsize, target_bytes=2 << 20):
    """Largest row tile (multiple of 8 dividing `rows`) under ~target_bytes."""
    if rows % 8 != 0:
        return rows
    tr = rows
    while tr > 8 and tr % 16 == 0 and tr * lanes * itemsize > target_bytes:
        tr //= 2
    return tr


def _batch_tile(N, Cp, Cout, L, in_item, cdt_item, out_item, budget=8 << 20):
    """Images per grid step: amortize per-step overhead while bounding VMEM."""
    per_img = Cp * L * in_item + Cout * L * out_item + 9 * Cp * L * cdt_item
    nb = int(max(1, min(N, budget // max(per_img, 1))))
    while N % nb:
        nb -= 1
    return nb


def _make_tap_masks(H, W, dtype):
    """(9, 1, H*W) 0/1 validity masks for the 3x3 taps (trace-time constant)."""
    L = H * W
    hh = np.repeat(np.arange(H), W)
    ww = np.tile(np.arange(W), H)
    rows = []
    for dh in (-1, 0, 1):
        for dw in (-1, 0, 1):
            valid = (hh + dh >= 0) & (hh + dh < H) & (ww + dw >= 0) & (ww + dw < W)
            rows.append(valid.astype(np.float32))
    return jnp.asarray(np.stack(rows).reshape(9, 1, L)).astype(dtype)


def prepare_conv_weight(w_oihw, compute_dtype=jnp.bfloat16):
    """One-time weight re-layout: (Cout, Cin, 3, 3) -> (Cout, 9*Cp), tap-major.

    K dimension is zero-padded so each tap's Cin block is sublane-aligned.
    Store the result with the params to avoid a per-call transpose + cast.
    """
    Cout, Cin, KH, KW = w_oihw.shape
    Cp = _round_up(Cin, _sublane_multiple(compute_dtype))
    w = jnp.transpose(w_oihw, (0, 2, 3, 1))                       # (Cout, 3, 3, Cin)
    if Cp != Cin:
        w = jnp.pad(w, ((0, 0), (0, 0), (0, 0), (0, Cp - Cin)))
    return w.reshape(Cout, KH * KW * Cp).astype(compute_dtype)


# ----------------------------------------------------------------------------
# Kernels (NCHW-native, lane axis = flattened H*W)
# ----------------------------------------------------------------------------
def _bn_relu_kernel(x_ref, scale_ref, bias_ref, o_ref):
    # x_ref: (TR, L) where rows are (n, c) pairs and lanes are H*W (native dtype).
    x = x_ref[...].astype(jnp.float32)                            # f32 VPU math
    y = jnp.maximum(x * scale_ref[...] + bias_ref[...], 0.0)
    o_ref[...] = y.astype(o_ref.dtype)                            # lane-dense store


def _bn_relu_conv3x3_kernel(x_ref, scale_ref, bias_ref, w_ref, mask_ref, o_ref,
                            *, H, W):
    """Fused BN(inference) -> ReLU -> 3x3 conv (stride 1, pad 1, no bias).

    x_ref:     (Nb, Cp, H*W)  Nb images, NCHW with spatial flattened to lanes.
    scale_ref: (Cp, 1)        folded BN scale (f32).
    bias_ref:  (Cp, 1)        folded BN bias (f32).
    w_ref:     (Cout, 9*Cp)   weights, tap-major, compute dtype.
    mask_ref:  (9, 1, H*W)    per-tap zero-padding validity mask, compute dtype.
    o_ref:     (Nb, Cout, H*W)
    """
    Nb, Cp, L = x_ref.shape
    cdt = w_ref.dtype
    w = w_ref[...]
    scale = scale_ref[...]
    bias = bias_ref[...]

    for b in range(Nb):                      # static unroll: Nb images per grid step
        # BatchNorm (folded) + ReLU in f32, then drop to the compute dtype so the
        # 9 rolls / masks / concat move half the bytes (bf16 on v6e/v7x).
        x = x_ref[b].astype(jnp.float32)                          # (Cp, L)
        y = jnp.maximum(x * scale + bias, 0.0).astype(cdt)        # (Cp, L)

        # im2col via XLU lane rotations + precomputed boundary masks:
        # patches[(kh*3+kw)*Cp + ci, h*W + w] = relu(bn(x))[ci, h+kh-1, w+kw-1]
        taps = []
        t = 0
        for dh in (-1, 0, 1):
            for dw in (-1, 0, 1):
                d = dh * W + dw
                shifted = y if d == 0 else pltpu.roll(y, shift=(-d) % L, axis=1)
                taps.append(shifted * mask_ref[t])                # (1,L) broadcast
                t += 1
        patches = jnp.concatenate(taps, axis=0)                   # (9*Cp, L), aligned

        # Single MXU matmul per image: (Cout, 9*Cp) x (9*Cp, L), f32 accumulation.
        out = jnp.dot(w, patches, preferred_element_type=jnp.float32)
        o_ref[b] = out.astype(o_ref.dtype)                        # lane-dense store


# ----------------------------------------------------------------------------
# Wrapper (NCHW in / NCHW out, like the PyTorch module)
# ----------------------------------------------------------------------------
def bottleneck_block_forward(x_nchw, params, *, compute_dtype=jnp.bfloat16):
    """params: gamma, beta, running_mean, running_var, eps, optional conv_w
    (Cout, Cin, 3, 3) and optional conv_w_prepared (from prepare_conv_weight).

    `compute_dtype` only affects the matmul operands (weights + im2col patches);
    BN/ReLU math and accumulation stay f32.  I/O stays in the input's dtype.
    """
    gamma, beta = params["gamma"], params["beta"]
    mean, var, eps = params["running_mean"], params["running_var"], params["eps"]

    # Fold BN into per-channel scale/bias (plain-JAX glue, f32).
    scale = (gamma / jnp.sqrt(var + eps)).astype(jnp.float32)     # (Cin,)
    bias = (beta - mean * scale).astype(jnp.float32)              # (Cin,)

    N, Cin, H, W = x_nchw.shape
    L = H * W
    out_dtype = x_nchw.dtype

    if "conv_w" not in params:
        # ---- BN + ReLU only (disable_conv): flat (N*Cin, H*W) elementwise ----
        R = N * Cin
        x2 = x_nchw.reshape(R, L)                                 # metadata-only
        scale_rows = jnp.tile(scale, N).reshape(R, 1)
        bias_rows = jnp.tile(bias, N).reshape(R, 1)
        tr = _row_tile(R, L, x2.dtype.itemsize, target_bytes=2 << 20)
        tile_bytes = tr * L * (x2.dtype.itemsize + jnp.dtype(out_dtype).itemsize)
        vmem_limit = int(min(max(2 * tile_bytes + (1 << 20), 8 << 20), 32 << 20))
        out2 = pl.pallas_call(
            _bn_relu_kernel,
            out_shape=jax.ShapeDtypeStruct((R, L), out_dtype),
            grid=(R // tr,),
            in_specs=[
                pl.BlockSpec((tr, L), lambda i: (i, 0)),
                pl.BlockSpec((tr, 1), lambda i: (i, 0)),
                pl.BlockSpec((tr, 1), lambda i: (i, 0)),
            ],
            out_specs=pl.BlockSpec((tr, L), lambda i: (i, 0)),
            compiler_params=pltpu.CompilerParams(
                dimension_semantics=("parallel",),
                vmem_limit_bytes=vmem_limit),
        )(x2, scale_rows, bias_rows)
        return out2.reshape(N, Cin, H, W)

    # ---- BN + ReLU + 3x3 conv (stride 1, pad 1, no bias) ----
    w_oihw = params["conv_w"]                                     # (Cout, Cin, 3, 3)
    Cout = w_oihw.shape[0]
    cdt = jnp.dtype(compute_dtype)
    Cp = _round_up(Cin, _sublane_multiple(compute_dtype))

    w2 = params.get("conv_w_prepared")
    if w2 is None or w2.dtype != cdt or w2.shape != (Cout, 9 * Cp):
        w2 = prepare_conv_weight(w_oihw, compute_dtype)           # fallback (per-call)

    x3 = x_nchw.reshape(N, Cin, L)                                # metadata-only
    if Cp != Cin:
        # Toy-shape only: production channel counts are already sublane-aligned,
        # so this pad (and its extra HBM bytes) disappears at real sizes.
        x3 = jnp.pad(x3, ((0, 0), (0, Cp - Cin), (0, 0)))
        scale = jnp.pad(scale, (0, Cp - Cin))
        bias = jnp.pad(bias, (0, Cp - Cin))
    scale2 = scale.reshape(Cp, 1)
    bias2 = bias.reshape(Cp, 1)
    masks = _make_tap_masks(H, W, compute_dtype)                  # (9, 1, L) constant

    in_item = x3.dtype.itemsize
    out_item = jnp.dtype(out_dtype).itemsize
    Nb = _batch_tile(N, Cp, Cout, L, in_item, cdt.itemsize, out_item)

    # VMEM budget from the actual block sizes (double-buffered in/out/weights).
    in_block = Nb * Cp * L * in_item
    out_block = Nb * Cout * L * out_item
    w_bytes = Cout * 9 * Cp * cdt.itemsize
    patches_bytes = 9 * Cp * L * cdt.itemsize + Cp * L * 4
    need = 2 * (in_block + out_block + w_bytes) + patches_bytes + (2 << 20)
    vmem_limit = int(min(max(need, 32 << 20), 64 << 20))

    flops = 2 * N * L * (9 * Cp) * Cout + 5 * N * Cp * L
    bytes_accessed = (N * Cp * L * in_item + N * Cout * L * out_item
                      + int(w2.size) * cdt.itemsize)

    kernel = functools.partial(_bn_relu_conv3x3_kernel, H=H, W=W)
    out = pl.pallas_call(
        kernel,
        out_shape=jax.ShapeDtypeStruct((N, Cout, L), out_dtype),
        grid=(N // Nb,),
        in_specs=[
            pl.BlockSpec((Nb, Cp, L), lambda n: (n, 0, 0)),
            pl.BlockSpec((Cp, 1), lambda n: (0, 0)),
            pl.BlockSpec((Cp, 1), lambda n: (0, 0)),
            pl.BlockSpec((Cout, 9 * Cp), lambda n: (0, 0)),
            pl.BlockSpec((9, 1, L), lambda n: (0, 0, 0)),
        ],
        out_specs=pl.BlockSpec((Nb, Cout, L), lambda n: (n, 0, 0)),
        compiler_params=pltpu.CompilerParams(
            # TODO(synk): verify the batch axis actually shards across v7x's two
            # TensorCores; switch to pltpu.CORE_PARALLEL / pl.core_map if not.
            dimension_semantics=("parallel",),
            vmem_limit_bytes=vmem_limit),
        cost_estimate=pl.CostEstimate(
            flops=int(flops), transcendentals=0, bytes_accessed=int(bytes_accessed)),
    )(x3, scale2, bias2, w2, masks)
    return out.reshape(N, Cout, H, W)


# ----------------------------------------------------------------------------
# Pure-JAX reference (for correctness check only)
# ----------------------------------------------------------------------------
def _reference_forward(x_nchw, params):
    gamma, beta = params["gamma"], params["beta"]
    mean, var, eps = params["running_mean"], params["running_var"], params["eps"]
    scale = gamma / jnp.sqrt(var + eps)
    bias = beta - mean * scale
    xf = x_nchw.astype(jnp.float32)
    y = jnp.maximum(xf * scale[None, :, None, None] + bias[None, :, None, None], 0.0)
    if "conv_w" not in params:
        return y
    return jax.lax.conv_general_dilated(
        y, params["conv_w"], window_strides=(1, 1), padding=((1, 1), (1, 1)),
        dimension_numbers=("NCHW", "OIHW", "NCHW"),
        preferred_element_type=jnp.float32)


# ----------------------------------------------------------------------------
# Main
# ----------------------------------------------------------------------------
if __name__ == "__main__":
    key = jax.random.PRNGKey(0)
    N, Cin, H, W = 2, 4, 16, 16
    Cout = 8

    k_x, k_g, k_b, k_m, k_v, k_w = jax.random.split(key, 6)
    x = jax.random.normal(k_x, (N, Cin, H, W), dtype=jnp.float32)

    params_conv = {
        "gamma": 1.0 + 0.1 * jax.random.normal(k_g, (Cin,), dtype=jnp.float32),
        "beta": 0.1 * jax.random.normal(k_b, (Cin,), dtype=jnp.float32),
        "running_mean": 0.05 * jax.random.normal(k_m, (Cin,), dtype=jnp.float32),
        "running_var": 1.0 + 0.1 * jnp.abs(jax.random.normal(k_v, (Cin,), dtype=jnp.float32)),
        "eps": 1e-5,
        "conv_w": 0.1 * jax.random.normal(k_w, (Cout, Cin, 3, 3), dtype=jnp.float32),
    }
    # One-time weight re-layout (bf16, tap-major) stored with the params.
    params_conv["conv_w_prepared"] = prepare_conv_weight(params_conv["conv_w"],
                                                         jnp.bfloat16)

    ref = jax.block_until_ready(_reference_forward(x, params_conv))

    # (1) Conv path, f32 matmul operands: strict check.
    out_f32 = jax.block_until_ready(
        bottleneck_block_forward(x, params_conv, compute_dtype=jnp.float32))
    assert out_f32.shape == (N, Cout, H, W)
    assert jnp.allclose(out_f32, ref, atol=1e-4, rtol=1e-4), "conv f32 path mismatch"

    # (2) Conv path, default bf16 operands, f32 I/O: relative-error metric.
    out_bf = jax.block_until_ready(bottleneck_block_forward(x, params_conv))
    rel = jnp.max(jnp.abs(out_bf - ref)) / (jnp.max(jnp.abs(ref)) + 1e-6)
    assert rel < 3e-2, f"conv bf16-operand path rel err {rel}"

    # (3) Conv path, bf16 input/output (native-dtype I/O).
    x_bf = x.astype(jnp.bfloat16)
    ref_bf = jax.block_until_ready(
        _reference_forward(x_bf.astype(jnp.float32), params_conv))
    out_bf_io = jax.block_until_ready(bottleneck_block_forward(x_bf, params_conv))
    assert out_bf_io.dtype == jnp.bfloat16
    rel = (jnp.max(jnp.abs(out_bf_io.astype(jnp.float32) - ref_bf))
           / (jnp.max(jnp.abs(ref_bf)) + 1e-6))
    assert rel < 4e-2, f"conv bf16-I/O path rel err {rel}"

    # (4) disable_conv path (in_planes == out_planes): BN + ReLU only.
    params_id = {k: v for k, v in params_conv.items()
                 if k not in ("conv_w", "conv_w_prepared")}
    out_id = jax.block_until_ready(bottleneck_block_forward(x, params_id))
    ref_id = jax.block_until_ready(_reference_forward(x, params_id))
    assert out_id.shape == (N, Cin, H, W)
    assert jnp.allclose(out_id, ref_id, atol=1e-5, rtol=1e-5), "bn-relu path mismatch"

    print("KERNEL_OK")
</pallas_src>

<mosaic_0001>
module attributes {stable_mosaic.version = 11 : i64} {
  func.func @_bn_relu_conv3x3_kernel(%arg0: i32, %arg1: memref<2x8x256xf32, #tpu.memory_space<vmem>>, %arg2: memref<8x1xf32, #tpu.memory_space<vmem>>, %arg3: memref<8x1xf32, #tpu.memory_space<vmem>>, %arg4: memref<8x72xf32, #tpu.memory_space<vmem>>, %arg5: memref<9x1x256xf32, #tpu.memory_space<vmem>>, %arg6: memref<2x8x256xf32, #tpu.memory_space<vmem>>) attributes {dimension_semantics = [#tpu.dimension_semantics<parallel>], iteration_bounds = array<i64: 1>, scalar_prefetch = 0 : i64, scratch_operands = 0 : i64, tpu.core_type = #tpu.core_type<tc>, window_params = [{transform_indices = @transform_0, window_bounds = array<i64: 2, 8, 256>}, {pipeline_mode = #tpu.pipeline_mode<synchronous>, transform_indices = @transform_1, window_bounds = array<i64: 8, 1>}, {pipeline_mode = #tpu.pipeline_mode<synchronous>, transform_indices = @transform_2, window_bounds = array<i64: 8, 1>}, {pipeline_mode = #tpu.pipeline_mode<synchronous>, transform_indices = @transform_3, window_bounds = array<i64: 8, 72>}, {pipeline_mode = #tpu.pipeline_mode<synchronous>, transform_indices = @transform_4, window_bounds = array<i64: 9, 1, 256>}, {transform_indices = @transform_5, window_bounds = array<i64: 2, 8, 256>}]} {
    %c0 = arith.constant 0 : index
    %c0_0 = arith.constant 0 : index
    %0 = vector.load %arg4[%c0, %c0_0] : memref<8x72xf32, #tpu.memory_space<vmem>>, vector<8x72xf32>
    %c0_1 = arith.constant 0 : index
    %c0_2 = arith.constant 0 : index
    %1 = vector.load %arg2[%c0_1, %c0_2] : memref<8x1xf32, #tpu.memory_space<vmem>>, vector<8x1xf32>
    %c0_3 = arith.constant 0 : index
    %c0_4 = arith.constant 0 : index
    %2 = vector.load %arg3[%c0_3, %c0_4] : memref<8x1xf32, #tpu.memory_space<vmem>>, vector<8x1xf32>
    %c0_5 = arith.constant 0 : index
    %c0_6 = arith.constant 0 : index
    %c0_7 = arith.constant 0 : index
    %3 = vector.load %arg1[%c0_5, %c0_6, %c0_7] : memref<2x8x256xf32, #tpu.memory_space<vmem>>, vector<1x8x256xf32>
    %4 = vector.shape_cast %3 : vector<1x8x256xf32> to vector<8x256xf32>
    %5 = vector.broadcast %1 : vector<8x1xf32> to vector<8x256xf32>
    %6 = arith.mulf %4, %5 : vector<8x256xf32>
    %7 = vector.broadcast %2 : vector<8x1xf32> to vector<8x256xf32>
    %8 = arith.addf %6, %7 : vector<8x256xf32>
    %cst = arith.constant 0.000000e+00 : f32
    %9 = vector.broadcast %cst : f32 to vector<8x256xf32>
    %10 = arith.maximumf %8, %9 : vector<8x256xf32>
    %c17_i32 = arith.constant 17 : i32
    %11 = tpu.dynamic_rotate %10 by %c17_i32 dim 1 : vector<8x256xf32>, i32 -> vector<8x256xf32>
    %c0_8 = arith.constant 0 : index
    %c0_9 = arith.constant 0 : index
    %c0_10 = arith.constant 0 : index
    %12 = vector.load %arg5[%c0_8, %c0_9, %c0_10] : memref<9x1x256xf32, #tpu.memory_space<vmem>>, vector<1x1x256xf32>
    %13 = vector.shape_cast %12 : vector<1x1x256xf32> to vector<1x256xf32>
    %14 = vector.broadcast %13 : vector<1x256xf32> to vector<8x256xf32>
    %15 = arith.mulf %11, %14 : vector<8x256xf32>
    %c16_i32 = arith.constant 16 : i32
    %16 = tpu.dynamic_rotate %10 by %c16_i32 dim 1 : vector<8x256xf32>, i32 -> vector<8x256xf32>
    %c1 = arith.constant 1 : index
    %c0_11 = arith.constant 0 : index
    %c0_12 = arith.constant 0 : index
    %17 = vector.load %arg5[%c1, %c0_11, %c0_12] : memref<9x1x256xf32, #tpu.memory_space<vmem>>, vector<1x1x256xf32>
    %18 = vector.shape_cast %17 : vector<1x1x256xf32> to vector<1x256xf32>
    %19 = vector.broadcast %18 : vector<1x256xf32> to vector<8x256xf32>
    %20 = arith.mulf %16, %19 : vector<8x256xf32>
    %c15_i32 = arith.constant 15 : i32
    %21 = tpu.dynamic_rotate %10 by %c15_i32 dim 1 : vector<8x256xf32>, i32 -> vector<8x256xf32>
    %c2 = arith.constant 2 : index
    %c0_13 = arith.constant 0 : index
    %c0_14 = arith.constant 0 : index
    %22 = vector.load %arg5[%c2, %c0_13, %c0_14] : memref<9x1x256xf32, #tpu.memory_space<vmem>>, vector<1x1x256xf32>
    %23 = vector.shape_cast %22 : vector<1x1x256xf32> to vector<1x256xf32>
    %24 = vector.broadcast %23 : vector<1x256xf32> to vector<8x256xf32>
    %25 = arith.mulf %21, %24 : vector<8x256xf32>
    %c1_i32 = arith.constant 1 : i32
    %26 = tpu.dynamic_rotate %10 by %c1_i32 dim 1 : vector<8x256xf32>, i32 -> vector<8x256xf32>
    %c3 = arith.constant 3 : index
    %c0_15 = arith.constant 0 : index
    %c0_16 = arith.constant 0 : index
    %27 = vector.load %arg5[%c3, %c0_15, %c0_16] : memref<9x1x256xf32, #tpu.memory_space<vmem>>, vector<1x1x256xf32>
    %28 = vector.shape_cast %27 : vector<1x1x256xf32> to vector<1x256xf32>
    %29 = vector.broadcast %28 : vector<1x256xf32> to vector<8x256xf32>
    %30 = arith.mulf %26, %29 : vector<8x256xf32>
    %c4 = arith.constant 4 : index
    %c0_17 = arith.constant 0 : index
    %c0_18 = arith.constant 0 : index
    %31 = vector.load %arg5[%c4, %c0_17, %c0_18] : memref<9x1x256xf32, #tpu.memory_space<vmem>>, vector<1x1x256xf32>
    %32 = vector.shape_cast %31 : vector<1x1x256xf32> to vector<1x256xf32>
    %33 = vector.broadcast %32 : vector<1x256xf32> to vector<8x256xf32>
    %34 = arith.mulf %10, %33 : vector<8x256xf32>
    %c255_i32 = arith.constant 255 : i32
    %35 = tpu.dynamic_rotate %10 by %c255_i32 dim 1 : vector<8x256xf32>, i32 -> vector<8x256xf32>
    %c5 = arith.constant 5 : index
    %c0_19 = arith.constant 0 : index
    %c0_20 = arith.constant 0 : index
    %36 = vector.load %arg5[%c5, %c0_19, %c0_20] : memref<9x1x256xf32, #tpu.memory_space<vmem>>, vector<1x1x256xf32>
    %37 = vector.shape_cast %36 : vector<1x1x256xf32> to vector<1x256xf32>
    %38 = vector.broadcast %37 : vector<1x256xf32> to vector<8x256xf32>
    %39 = arith.mulf %35, %38 : vector<8x256xf32>
    %c241_i32 = arith.constant 241 : i32
    %40 = tpu.dynamic_rotate %10 by %c241_i32 dim 1 : vector<8x256xf32>, i32 -> vector<8x256xf32>
    %c6 = arith.constant 6 : index
    %c0_21 = arith.constant 0 : index
    %c0_22 = arith.constant 0 : index
    %41 = vector.load %arg5[%c6, %c0_21, %c0_22] : memref<9x1x256xf32, #tpu.memory_space<vmem>>, vector<1x1x256xf32>
    %42 = vector.shape_cast %41 : vector<1x1x256xf32> to vector<1x256xf32>
    %43 = vector.broadcast %42 : vector<1x256xf32> to vector<8x256xf32>
    %44 = arith.mulf %40, %43 : vector<8x256xf32>
    %c240_i32 = arith.constant 240 : i32
    %45 = tpu.dynamic_rotate %10 by %c240_i32 dim 1 : vector<8x256xf32>, i32 -> vector<8x256xf32>
    %c7 = arith.constant 7 : index
    %c0_23 = arith.constant 0 : index
    %c0_24 = arith.constant 0 : index
    %46 = vector.load %arg5[%c7, %c0_23, %c0_24] : memref<9x1x256xf32, #tpu.memory_space<vmem>>, vector<1x1x256xf32>
    %47 = vector.shape_cast %46 : vector<1x1x256xf32> to vector<1x256xf32>
    %48 = vector.broadcast %47 : vector<1x256xf32> to vector<8x256xf32>
    %49 = arith.mulf %45, %48 : vector<8x256xf32>
    %c239_i32 = arith.constant 239 : i32
    %50 = tpu.dynamic_rotate %10 by %c239_i32 dim 1 : vector<8x256xf32>, i32 -> vector<8x256xf32>
    %c8 = arith.constant 8 : index
    %c0_25 = arith.constant 0 : index
    %c0_26 = arith.constant 0 : index
    %51 = vector.load %arg5[%c8, %c0_25, %c0_26] : memref<9x1x256xf32, #tpu.memory_space<vmem>>, vector<1x1x256xf32>
    %52 = vector.shape_cast %51 : vector<1x1x256xf32> to vector<1x256xf32>
    %53 = vector.broadcast %52 : vector<1x256xf32> to vector<8x256xf32>
    %54 = arith.mulf %50, %53 : vector<8x256xf32>
    %55 = tpu.concatenate %15, %20, %25, %30, %34, %39, %44, %49, %54 in 0 : vector<8x256xf32>, vector<8x256xf32>, vector<8x256xf32>, vector<8x256xf32>, vector<8x256xf32>, vector<8x256xf32>, vector<8x256xf32>, vector<8x256xf32>, vector<8x256xf32> -> vector<72x256xf32>
    %cst_27 = arith.constant dense<0.000000e+00> : vector<8x256xf32>
    %56 = tpu.matmul %0, %55, %cst_27 {dimension_numbers = #tpu.dot_dimension_numbers<[1], [0], [0], [1], [0, 0, 1, 1], [], []>} : vector<8x72xf32>, vector<72x256xf32>, vector<8x256xf32> -> vector<8x256xf32>
    %c0_28 = arith.constant 0 : index
    %c0_29 = arith.constant 0 : index
    %c0_30 = arith.constant 0 : index
    %57 = vector.load %arg6[%c0_28, %c0_29, %c0_30] : memref<2x8x256xf32, #tpu.memory_space<vmem>>, vector<1x8x256xf32>
    %58 = vector.shape_cast %57 : vector<1x8x256xf32> to vector<8x256xf32>
    %59 = vector.shape_cast %56 : vector<8x256xf32> to vector<1x8x256xf32>
    tpu.vector_store %arg6[%c0_28, %c0_29, %c0_30], %59 {strides = array<i32>} : memref<2x8x256xf32, #tpu.memory_space<vmem>>, vector<1x8x256xf32>,
    %c1_31 = arith.constant 1 : index
    %c0_32 = arith.constant 0 : index
    %c0_33 = arith.constant 0 : index
    %60 = vector.load %arg1[%c1_31, %c0_32, %c0_33] : memref<2x8x256xf32, #tpu.memory_space<vmem>>, vector<1x8x256xf32>
    %61 = vector.shape_cast %60 : vector<1x8x256xf32> to vector<8x256xf32>
    %62 = vector.broadcast %1 : vector<8x1xf32> to vector<8x256xf32>
    %63 = arith.mulf %61, %62 : vector<8x256xf32>
    %64 = vector.broadcast %2 : vector<8x1xf32> to vector<8x256xf32>
    %65 = arith.addf %63, %64 : vector<8x256xf32>
    %cst_34 = arith.constant 0.000000e+00 : f32
    %66 = vector.broadcast %cst_34 : f32 to vector<8x256xf32>
    %67 = arith.maximumf %65, %66 : vector<8x256xf32>
    %c17_i32_35 = arith.constant 17 : i32
    %68 = tpu.dynamic_rotate %67 by %c17_i32_35 dim 1 : vector<8x256xf32>, i32 -> vector<8x256xf32>
    %c0_36 = arith.constant 0 : index
    %c0_37 = arith.constant 0 : index
    %c0_38 = arith.constant 0 : index
    %69 = vector.load %arg5[%c0_36, %c0_37, %c0_38] : memref<9x1x256xf32, #tpu.memory_space<vmem>>, vector<1x1x256xf32>
    %70 = vector.shape_cast %69 : vector<1x1x256xf32> to vector<1x256xf32>
    %71 = vector.broadcast %70 : vector<1x256xf32> to vector<8x256xf32>
    %72 = arith.mulf %68, %71 : vector<8x256xf32>
    %c16_i32_39 = arith.constant 16 : i32
    %73 = tpu.dynamic_rotate %67 by %c16_i32_39 dim 1 : vector<8x256xf32>, i32 -> vector<8x256xf32>
    %c1_40 = arith.constant 1 : index
    %c0_41 = arith.constant 0 : index
    %c0_42 = arith.constant 0 : index
    %74 = vector.load %arg5[%c1_40, %c0_41, %c0_42] : memref<9x1x256xf32, #tpu.memory_space<vmem>>, vector<1x1x256xf32>
    %75 = vector.shape_cast %74 : vector<1x1x256xf32> to vector<1x256xf32>
    %76 = vector.broadcast %75 : vector<1x256xf32> to vector<8x256xf32>
    %77 = arith.mulf %73, %76 : vector<8x256xf32>
    %c15_i32_43 = arith.constant 15 : i32
    %78 = tpu.dynamic_rotate %67 by %c15_i32_43 dim 1 : vector<8x256xf32>, i32 -> vector<8x256xf32>
    %c2_44 = arith.constant 2 : index
    %c0_45 = arith.constant 0 : index
    %c0_46 = arith.constant 0 : index
    %79 = vector.load %arg5[%c2_44, %c0_45, %c0_46] : memref<9x1x256xf32, #tpu.memory_space<vmem>>, vector<1x1x256xf32>
    %80 = vector.shape_cast %79 : vector<1x1x256xf32> to vector<1x256xf32>
    %81 = vector.broadcast %80 : vector<1x256xf32> to vector<8x256xf32>
    %82 = arith.mulf %78, %81 : vector<8x256xf32>
    %c1_i32_47 = arith.constant 1 : i32
    %83 = tpu.dynamic_rotate %67 by %c1_i32_47 dim 1 : vector<8x256xf32>, i32 -> vector<8x256xf32>
    %c3_48 = arith.constant 3 : index
    %c0_49 = arith.constant 0 : index
    %c0_50 = arith.constant 0 : index
    %84 = vector.load %arg5[%c3_48, %c0_49, %c0_50] : memref<9x1x256xf32, #tpu.memory_space<vmem>>, vector<1x1x256xf32>
    %85 = vector.shape_cast %84 : vector<1x1x256xf32> to vector<1x256xf32>
    %86 = vector.broadcast %85 : vector<1x256xf32> to vector<8x256xf32>
    %87 = arith.mulf %83, %86 : vector<8x256xf32>
    %c4_51 = arith.constant 4 : index
    %c0_52 = arith.constant 0 : index
    %c0_53 = arith.constant 0 : index
    %88 = vector.load %arg5[%c4_51, %c0_52, %c0_53] : memref<9x1x256xf32, #tpu.memory_space<vmem>>, vector<1x1x256xf32>
    %89 = vector.shape_cast %88 : vector<1x1x256xf32> to vector<1x256xf32>
    %90 = vector.broadcast %89 : vector<1x256xf32> to vector<8x256xf32>
    %91 = arith.mulf %67, %90 : vector<8x256xf32>
    %c255_i32_54 = arith.constant 255 : i32
    %92 = tpu.dynamic_rotate %67 by %c255_i32_54 dim 1 : vector<8x256xf32>, i32 -> vector<8x256xf32>
    %c5_55 = arith.constant 5 : index
    %c0_56 = arith.constant 0 : index
    %c0_57 = arith.constant 0 : index
    %93 = vector.load %arg5[%c5_55, %c0_56, %c0_57] : memref<9x1x256xf32, #tpu.memory_space<vmem>>, vector<1x1x256xf32>
    %94 = vector.shape_cast %93 : vector<1x1x256xf32> to vector<1x256xf32>
    %95 = vector.broadcast %94 : vector<1x256xf32> to vector<8x256xf32>
    %96 = arith.mulf %92, %95 : vector<8x256xf32>
    %c241_i32_58 = arith.constant 241 : i32
    %97 = tpu.dynamic_rotate %67 by %c241_i32_58 dim 1 : vector<8x256xf32>, i32 -> vector<8x256xf32>
    %c6_59 = arith.constant 6 : index
    %c0_60 = arith.constant 0 : index
    %c0_61 = arith.constant 0 : index
    %98 = vector.load %arg5[%c6_59, %c0_60, %c0_61] : memref<9x1x256xf32, #tpu.memory_space<vmem>>, vector<1x1x256xf32>
    %99 = vector.shape_cast %98 : vector<1x1x256xf32> to vector<1x256xf32>
    %100 = vector.broadcast %99 : vector<1x256xf32> to vector<8x256xf32>
    %101 = arith.mulf %97, %100 : vector<8x256xf32>
    %c240_i32_62 = arith.constant 240 : i32
    %102 = tpu.dynamic_rotate %67 by %c240_i32_62 dim 1 : vector<8x256xf32>, i32 -> vector<8x256xf32>
    %c7_63 = arith.constant 7 : index
    %c0_64 = arith.constant 0 : index
    %c0_65 = arith.constant 0 : index
    %103 = vector.load %arg5[%c7_63, %c0_64, %c0_65] : memref<9x1x256xf32, #tpu.memory_space<vmem>>, vector<1x1x256xf32>
    %104 = vector.shape_cast %103 : vector<1x1x256xf32> to vector<1x256xf32>
    %105 = vector.broadcast %104 : vector<1x256xf32> to vector<8x256xf32>
    %106 = arith.mulf %102, %105 : vector<8x256xf32>
    %c239_i32_66 = arith.constant 239 : i32
    %107 = tpu.dynamic_rotate %67 by %c239_i32_66 dim 1 : vector<8x256xf32>, i32 -> vector<8x256xf32>
    %c8_67 = arith.constant 8 : index
    %c0_68 = arith.constant 0 : index
    %c0_69 = arith.constant 0 : index
    %108 = vector.load %arg5[%c8_67, %c0_68, %c0_69] : memref<9x1x256xf32, #tpu.memory_space<vmem>>, vector<1x1x256xf32>
    %109 = vector.shape_cast %108 : vector<1x1x256xf32> to vector<1x256xf32>
    %110 = vector.broadcast %109 : vector<1x256xf32> to vector<8x256xf32>
    %111 = arith.mulf %107, %110 : vector<8x256xf32>
    %112 = tpu.concatenate %72, %77, %82, %87, %91, %96, %101, %106, %111 in 0 : vector<8x256xf32>, vector<8x256xf32>, vector<8x256xf32>, vector<8x256xf32>, vector<8x256xf32>, vector<8x256xf32>, vector<8x256xf32>, vector<8x256xf32>, vector<8x256xf32> -> vector<72x256xf32>
    %cst_70 = arith.constant dense<0.000000e+00> : vector<8x256xf32>
    %113 = tpu.matmul %0, %112, %cst_70 {dimension_numbers = #tpu.dot_dimension_numbers<[1], [0], [0], [1], [0, 0, 1, 1], [], []>} : vector<8x72xf32>, vector<72x256xf32>, vector<8x256xf32> -> vector<8x256xf32>
    %c1_71 = arith.constant 1 : index
    %c0_72 = arith.constant 0 : index
    %c0_73 = arith.constant 0 : index
    %114 = vector.load %arg6[%c1_71, %c0_72, %c0_73] : memref<2x8x256xf32, #tpu.memory_space<vmem>>, vector<1x8x256xf32>
    %115 = vector.shape_cast %114 : vector<1x8x256xf32> to vector<8x256xf32>
    %116 = vector.shape_cast %113 : vector<8x256xf32> to vector<1x8x256xf32>
    tpu.vector_store %arg6[%c1_71, %c0_72, %c0_73], %116 {strides = array<i32>} : memref<2x8x256xf32, #tpu.memory_space<vmem>>, vector<1x8x256xf32>,
    return
  }
  func.func @transform_0(%arg0: i32) -> (i32, i32, i32) {
    %c0_i32 = arith.constant 0 : i32
    %c0_i32_0 = arith.constant 0 : i32
    %c0_i32_1 = arith.constant 0 : i32
    return %arg0, %c0_i32, %c0_i32_0 : i32, i32, i32
  }
  func.func @transform_1(%arg0: i32) -> (i32, i32) {
    %c0_i32 = arith.constant 0 : i32
    %c0_i32_0 = arith.constant 0 : i32
    %c0_i32_1 = arith.constant 0 : i32
    return %c0_i32, %c0_i32_0 : i32, i32
  }
  func.func @transform_2(%arg0: i32) -> (i32, i32) {
    %c0_i32 = arith.constant 0 : i32
    %c0_i32_0 = arith.constant 0 : i32
    %c0_i32_1 = arith.constant 0 : i32
    return %c0_i32, %c0_i32_0 : i32, i32
  }
  func.func @transform_3(%arg0: i32) -> (i32, i32) {
    %c0_i32 = arith.constant 0 : i32
    %c0_i32_0 = arith.constant 0 : i32
    %c0_i32_1 = arith.constant 0 : i32
    return %c0_i32, %c0_i32_0 : i32, i32
  }
  func.func @transform_4(%arg0: i32) -> (i32, i32, i32) {
    %c0_i32 = arith.constant 0 : i32
    %c0_i32_0 = arith.constant 0 : i32
    %c0_i32_1 = arith.constant 0 : i32
    %c0_i32_2 = arith.constant 0 : i32
    return %c0_i32, %c0_i32_0, %c0_i32_1 : i32, i32, i32
  }
  func.func @transform_5(%arg0: i32) -> (i32, i32, i32) {
    %c0_i32 = arith.constant 0 : i32
    %c0_i32_0 = arith.constant 0 : i32
    %c0_i32_1 = arith.constant 0 : i32
    return %arg0, %c0_i32, %c0_i32_0 : i32, i32, i32
  }
}

</mosaic_0001>

<llo_original>
// kernel: tpu_custom_call.1
$region0: #{tpu_custom_call.1}
  #allocation0 [shape = 'u32[]', space=smem, size = 0x4, offset = 0x4, fixed_abs, tag = 'smem constant byte address 0x4 - core index']
  #allocation1 [shape = 'u32[144,128]{1,0:T(1,128)}', space=vmem, size = 0x12000, scoped, tag = 'internal scratch']
  %s0 = inlined_call_operand.hbm [shape: f32[2,8,256], index: 0, kind: input, shape index: {}]
  %s1 = inlined_call_operand.vmem [shape: f32[8,1], index: 1, kind: input, shape index: {}]
  %s2 = inlined_call_operand.vmem [shape: f32[8,1], index: 2, kind: input, shape index: {}]
  %s3 = inlined_call_operand.vmem [shape: f32[8,72], index: 3, kind: input, shape index: {}]
  %s4 = inlined_call_operand.vmem [shape: f32[9,1,256], index: 4, kind: input, shape index: {}]
  %s5 = inlined_call_operand.hbm [shape: f32[2,8,256], index: 5, kind: output, shape index: {}]
  %s6 = sld [smem:[#allocation0]]
  $region34: #{tpu_custom_call.1} parent=0
    _
  %s8 = ssub.s32 1, %s6
  %s9 = scalar_select 0, %s8, %s6
  $region1: #{tpu_custom_call.1} parent=0
    #allocation2 [shape = 'u8[16384]{0}', space=vmem, size = 0x4000, scoped, tag = 'input window, operand 0, single buffered']
    #allocation3 [shape = 's32[1]{0}', space=sflag, size = 0x4, scoped, tag = 'scoped memory for tpu_custom_call.1']
    #allocation4 [shape = 's32[1]{0}', space=sflag, size = 0x4, scoped, tag = 'scoped memory for tpu_custom_call.1']
    #allocation5 [shape = 'u8[16384]{0}', space=vmem, size = 0x4000, scoped, tag = 'output window, operand 0, single buffered']
    %10 = vsyncpa [#allocation3], 0
    %11 = vsyncpa [#allocation4], 0
    // Predicated region
    $region2: #{tpu_custom_call.1} parent=1 // pred_check
      _
    $region3: #{tpu_custom_call.1} parent=1 // pred_check_branch
      %13 = sbr.rel (0) target = $region5
    $region4: #{tpu_custom_call.1} parent=1 // pred_region
      %s15 = ssub.s32 512, 512
      %16 = vsyncadd [#allocation3], %s15
      %s17 = sshll.u32 [#allocation2], 4
      %s18 = int_to_ptr.vmem [resolvable:$true] %s17
      %23 = dma.hbm_to_vmem [thread:$0]  %s0, 512, %s18, [#allocation3], 256, 256, 16
    $region5: #{tpu_custom_call.1} parent=1 // pred_fallthru
      _
    // Predicated region
    $region6: #{tpu_custom_call.1} parent=1 // pred_check
      _
    $region7: #{tpu_custom_call.1} parent=1 // pred_check_branch
      %25 = sbr.rel (0) target = $region9
    $region8: #{tpu_custom_call.1} parent=1 // pred_region
      _
    $region9: #{tpu_custom_call.1} parent=1 // pred_fallthru
      _
    // Predicated region
    $region10: #{tpu_custom_call.1} parent=1 // pred_check
      _
    $region11: #{tpu_custom_call.1} parent=1 // pred_check_branch
      %27 = sbr.rel (0) target = $region13
    $region12: #{tpu_custom_call.1} parent=1 // pred_region
      _
    $region13: #{tpu_custom_call.1} parent=1 // pred_fallthru
      _
    // Predicated region
    $region14: #{tpu_custom_call.1} parent=1 // pred_check
      _
    $region15: #{tpu_custom_call.1} parent=1 // pred_check_branch
      %29 = sbr.rel (0) target = $region17
    $region16: #{tpu_custom_call.1} parent=1 // pred_region
      _
    $region17: #{tpu_custom_call.1} parent=1 // pred_fallthru
      _
    // Predicated region
    $region18: #{tpu_custom_call.1} parent=1 // pred_check
      _
    $region19: #{tpu_custom_call.1} parent=1 // pred_check_branch
      %31 = sbr.rel (0) target = $region21
    $region20: #{tpu_custom_call.1} parent=1 // pred_region
      _
    $region21: #{tpu_custom_call.1} parent=1 // pred_fallthru
      _
    // Predicated region
    $region22: #{tpu_custom_call.1} parent=1 // pred_check
      _
    $region23: #{tpu_custom_call.1} parent=1 // pred_check_branch
      %33 = sbr.rel (0) target = $region25
    $region24: #{tpu_custom_call.1} parent=1 // pred_region
      %34 = dma.done [#allocation3], 512
    $region25: #{tpu_custom_call.1} parent=1 // pred_fallthru
      _
    %v35 = vld [vmem:[%s3] sm:$0xff]
    %v36 = vld [vmem:[%s1] sm:$0xff]
    %v37 = vld [vmem:[%s2] sm:$0xff]
    %v38 = vld [vmem:[#allocation2] sm:$0xff]
    %v39 = vld [vmem:[#allocation2 + $0x8] sm:$0xff]
    %41 = vset.pattern.permute.xlu0 0
    %42 = vperm.xlu0 %41, %v36
    %v43 = vpop.permute.xlu0 %42
    %v45 = vmul.f32 %v38, %v43
    %v46 = vmul.f32 %v39, %v43
    %48 = vset.pattern.permute.xlu0 0
    %49 = vperm.xlu0 %48, %v37
    %v50 = vpop.permute.xlu0 %49
    %v52 = vadd.f32 %v45, %v50
    %v53 = vadd.f32 %v46, %v50
    %v54 = vmax.f32 %v52, 0.0
    %v55 = vmax.f32 %v53, 0.0
    %56 = vrot.lane.b32.xlu0 %v54, 17
    %v57 = vpop.permute.xlu0 %56
    %58 = vrot.lane.b32.xlu0 %v55, 17
    %v59 = vpop.permute.xlu0 %58
    %v60 = vlaneseq
    %v61 = vand.u32 %v60, 127
    %vm62 = vcmp.lt.s32.totalorder %v61, 17
    %v63 = vsel %vm62, %v57, %v59
    %v64 = vsel %vm62, %v59, %v57
    %v65 = vld [vmem:[%s4] sm:$0x3]
    %v67 = vlaneseq
    %v68 = vshrl.u32 %v67, 7
    %v69 = vsub.s32 0, %v68
    %v70 = vrot.slane %v65, %v69
    %v71 = vlaneseq
    %v72 = vshrl.u32 %v71, 7
    %v73 = vsub.s32 1, %v72
    %v74 = vrot.slane %v65, %v73
    %v77 = vmul.f32 %v64, %v70
    %v78 = vmul.f32 %v63, %v74
    %79 = vrot.lane.b32.xlu0 %v54, 16
    %v80 = vpop.permute.xlu0 %79
    %81 = vrot.lane.b32.xlu0 %v55, 16
    %v82 = vpop.permute.xlu0 %81
    %vm83 = vcmp.lt.s32.totalorder %v61, 16
    %v84 = vsel %vm83, %v80, %v82
    %v85 = vsel %vm83, %v82, %v80
    %s86 = scalar_lea.vmem %s4, 2
    %v87 = vld [vmem:[%s86] sm:$0x3]
    %v89 = vlaneseq
    %v90 = vshrl.u32 %v89, 7
    %v91 = vsub.s32 0, %v90
    %v92 = vrot.slane %v87, %v91
    %v93 = vlaneseq
    %v94 = vshrl.u32 %v93, 7
    %v95 = vsub.s32 1, %v94
    %v96 = vrot.slane %v87, %v95
    %v99 = vmul.f32 %v85, %v92
    %v100 = vmul.f32 %v84, %v96
    %101 = vrot.lane.b32.xlu0 %v54, 15
    %v102 = vpop.permute.xlu0 %101
    %103 = vrot.lane.b32.xlu0 %v55, 15
    %v104 = vpop.permute.xlu0 %103
    %vm105 = vcmp.lt.s32.totalorder %v61, 15
    %v106 = vsel %vm105, %v102, %v104
    %v107 = vsel %vm105, %v104, %v102
    %s108 = scalar_lea.vmem %s4, 4
    %v109 = vld [vmem:[%s108] sm:$0x3]
    %v111 = vlaneseq
    %v112 = vshrl.u32 %v111, 7
    %v113 = vsub.s32 0, %v112
    %v114 = vrot.slane %v109, %v113
    %v115 = vlaneseq
    %v116 = vshrl.u32 %v115, 7
    %v117 = vsub.s32 1, %v116
    %v118 = vrot.slane %v109, %v117
    %v121 = vmul.f32 %v107, %v114
    %v122 = vmul.f32 %v106, %v118
    %123 = vrot.lane.b32.xlu0 %v54, 1
    %v124 = vpop.permute.xlu0 %123
    %125 = vrot.lane.b32.xlu0 %v55, 1
    %v126 = vpop.permute.xlu0 %125
    %vm127 = vcmp.lt.s32.totalorder %v61, 1
    %v128 = vsel %vm127, %v124, %v126
    %v129 = vsel %vm127, %v126, %v124
    %s130 = scalar_lea.vmem %s4, 6
    %v131 = vld [vmem:[%s130] sm:$0x3]
    %v133 = vlaneseq
    %v134 = vshrl.u32 %v133, 7
    %v135 = vsub.s32 0, %v134
    %v136 = vrot.slane %v131, %v135
    %v137 = vlaneseq
    %v138 = vshrl.u32 %v137, 7
    %v139 = vsub.s32 1, %v138
    %v140 = vrot.slane %v131, %v139
    %v143 = vmul.f32 %v129, %v136
    %v144 = vmul.f32 %v128, %v140
    %s145 = scalar_lea.vmem %s4, 8
    %v146 = vld [vmem:[%s145] sm:$0x3]
    %v148 = vlaneseq
    %v149 = vshrl.u32 %v148, 7
    %v150 = vsub.s32 0, %v149
    %v151 = vrot.slane %v146, %v150
    %v152 = vlaneseq
    %v153 = vshrl.u32 %v152, 7
    %v154 = vsub.s32 1, %v153
    %v155 = vrot.slane %v146, %v154
    %v158 = vmul.f32 %v54, %v151
    %v159 = vmul.f32 %v55, %v155
    %160 = vrot.lane.b32.xlu0 %v54, 127
    %v161 = vpop.permute.xlu0 %160
    %162 = vrot.lane.b32.xlu0 %v55, 127
    %v163 = vpop.permute.xlu0 %162
    %vm164 = vcmp.lt.s32.totalorder %v61, 127
    %v165 = vsel %vm164, %v161, %v163
    %v166 = vsel %vm164, %v163, %v161
    %s167 = scalar_lea.vmem %s4, 10
    %v168 = vld [vmem:[%s167] sm:$0x3]
    %v170 = vlaneseq
    %v171 = vshrl.u32 %v170, 7
    %v172 = vsub.s32 0, %v171
    %v173 = vrot.slane %v168, %v172
    %v174 = vlaneseq
    %v175 = vshrl.u32 %v174, 7
    %v176 = vsub.s32 1, %v175
    %v177 = vrot.slane %v168, %v176
    %v180 = vmul.f32 %v165, %v173
    %v181 = vmul.f32 %v166, %v177
    %182 = vrot.lane.b32.xlu0 %v54, 113
    %v183 = vpop.permute.xlu0 %182
    %184 = vrot.lane.b32.xlu0 %v55, 113
    %v185 = vpop.permute.xlu0 %184
    %vm186 = vcmp.lt.s32.totalorder %v61, 113
    %v187 = vsel %vm186, %v183, %v185
    %v188 = vsel %vm186, %v185, %v183
    %s189 = scalar_lea.vmem %s4, 12
    %v190 = vld [vmem:[%s189] sm:$0x3]
    %v192 = vlaneseq
    %v193 = vshrl.u32 %v192, 7
    %v194 = vsub.s32 0, %v193
    %v195 = vrot.slane %v190, %v194
    %v196 = vlaneseq
    %v197 = vshrl.u32 %v196, 7
    %v198 = vsub.s32 1, %v197
    %v199 = vrot.slane %v190, %v198
    %v202 = vmul.f32 %v187, %v195
    %v203 = vmul.f32 %v188, %v199
    %204 = vrot.lane.b32.xlu0 %v54, 112
    %v205 = vpop.permute.xlu0 %204
    %206 = vrot.lane.b32.xlu0 %v55, 112
    %v207 = vpop.permute.xlu0 %206
    %vm208 = vcmp.lt.s32.totalorder %v61, 112
    %v209 = vsel %vm208, %v205, %v207
    %v210 = vsel %vm208, %v207, %v205
    %s211 = scalar_lea.vmem %s4, 14
    %v212 = vld [vmem:[%s211] sm:$0x3]
    %v214 = vlaneseq
    %v215 = vshrl.u32 %v214, 7
    %v216 = vsub.s32 0, %v215
    %v217 = vrot.slane %v212, %v216
    %v218 = vlaneseq
    %v219 = vshrl.u32 %v218, 7
    %v220 = vsub.s32 1, %v219
    %v221 = vrot.slane %v212, %v220
    %v224 = vmul.f32 %v209, %v217
    %v225 = vmul.f32 %v210, %v221
    %226 = vrot.lane.b32.xlu0 %v54, 111
    %v227 = vpop.permute.xlu0 %226
    %228 = vrot.lane.b32.xlu0 %v55, 111
    %v229 = vpop.permute.xlu0 %228
    %vm230 = vcmp.lt.s32.totalorder %v61, 111
    %v231 = vsel %vm230, %v227, %v229
    %v232 = vsel %vm230, %v229, %v227
    %s233 = scalar_lea.vmem %s4, 16
    %v234 = vld [vmem:[%s233] sm:$0x3]
    %v236 = vlaneseq
    %v237 = vshrl.u32 %v236, 7
    %v238 = vsub.s32 0, %v237
    %v239 = vrot.slane %v234, %v238
    %v240 = vlaneseq
    %v241 = vshrl.u32 %v240, 7
    %v242 = vsub.s32 1, %v241
    %v243 = vrot.slane %v234, %v242
    %v246 = vmul.f32 %v231, %v239
    %v247 = vmul.f32 %v232, %v243
    %vm248 = vcmask 588800
    %v250 = vsel %vm248, %v35, 0
    %252 = vmatprep.subr.mxu0 %v78
    %253 = vmatpush1.msra.mxu0 %v77
    %254 = vmatprep.subr.mxu0 %v100
    %255 = vmatpush1.msra.mxu0 %v99
    %256 = vmatprep.subr.mxu0 %v122
    %257 = vmatpush1.msra.mxu0 %v121
    %258 = vmatprep.subr.mxu0 %v144
    %259 = vmatpush1.msra.mxu0 %v143
    %260 = vmatprep.subr.mxu0 %v159
    %261 = vmatpush1.msra.mxu0 %v158
    %262 = vmatprep.subr.mxu0 %v181
    %263 = vmatpush1.msra.mxu0 %v180
    %264 = vmatprep.subr.mxu0 %v203
    %265 = vmatpush1.msra.mxu0 %v202
    %266 = vmatprep.subr.mxu0 %v225
    %267 = vmatpush1.msra.mxu0 %v224
    %268 = vmatprep.subr.mxu0 %v247
    %269 = vmatpush1.msra.mxu0 %v246
    %270 = vmatprep.subr.mxu0 0.0
    %271 = vmatpush1.msra.mxu0 0.0
    %272 = vmatprep.subr.mxu0 0.0
    %273 = vmatpush1.msra.mxu0 0.0
    %274 = vmatprep.subr.mxu0 0.0
    %275 = vmatpush1.msra.mxu0 0.0
    %276 = vmatprep.subr.mxu0 0.0
    %277 = vmatpush1.msra.mxu0 0.0
    %278 = vmatprep.subr.mxu0 0.0
    %279 = vmatpush1.msra.mxu0 0.0
    %280 = vmatprep.subr.mxu0 0.0
    %281 = vmatpush1.msra.mxu0 0.0
    %282 = vmatprep.subr.mxu0 0.0
    %283 = vmatpush1.msra.mxu0 0.0
    %284 = vmatprep.subr.mxu0 0.0
    %285 = vmatpush1.msra.mxu0 0.0
    %286 = vmatprep.subr.mxu0 0.0
    %287 = vmatpush1.msra.mxu0 0.0
    %288 = vmatprep.subr.mxu0 0.0
    %289 = vmatpush1.msra.mxu0 0.0
    %290 = vmatprep.subr.mxu0 0.0
    %291 = vmatpush1.msra.mxu0 0.0
    %292 = vmatprep.subr.mxu0 0.0
    %293 = vmatpush1.msra.mxu0 0.0
    %294 = vmatprep.subr.mxu0 0.0
    %295 = vmatpush1.msra.mxu0 0.0
    %296 = vmatprep.subr.mxu0 0.0
    %297 = vmatpush1.msra.mxu0 0.0
    %298 = vmatprep.subr.mxu0 0.0
    %299 = vmatpush1.msra.mxu0 0.0
    %300 = vmatprep.subr.mxu0 0.0
    %301 = vmatpush1.msra.mxu0 0.0
    %302 = vmatprep.subr.mxu0 0.0
    %303 = vmatpush1.msra.mxu0 0.0
    %304 = vmatprep.subr.mxu0 0.0
    %305 = vmatpush1.msra.mxu0 0.0
    %306 = vmatprep.subr.mxu0 0.0
    %307 = vmatpush1.msra.mxu0 0.0
    %308 = vmatprep.subr.mxu0 0.0
    %309 = vmatpush1.msra.mxu0 0.0
    %310 = vmatprep.subr.mxu0 0.0
    %311 = vmatpush1.msra.mxu0 0.0
    %312 = vmatprep.subr.mxu0 0.0
    %313 = vmatpush1.msra.mxu0 0.0
    %314 = vmatprep.subr.mxu0 0.0
    %315 = vmatpush1.msra.mxu0 0.0
    %316 = vmatprep.mubr.f32.mxu0 0.0
    %317 = vmatmul.mubr.f32.gmra.mrb[0].mxu0 %v250
    %v318 = vpop.f32.mrb[0].mxu0
    %v319 = vadd.f32 0.0, %v318
    %v320 = vpop.f32.mrb[0].mxu0
    %v321 = vadd.f32 0.0, %v320
    %322 = vdwg.mxu0
    %323 = vst [vmem:[#allocation5] sm:$0xff] %v319
    %324 = vst [vmem:[#allocation5 + $0x8] sm:$0xff] %v321
    %s325 = scalar_lea.vmem [#allocation2], 16
    %v326 = vld [vmem:[%s325] sm:$0xff]
    %v327 = vld [vmem:[%s325 + $0x8] sm:$0xff]
    %v328 = vmul.f32 %v326, %v43
    %v329 = vmul.f32 %v327, %v43
    %v330 = vadd.f32 %v328, %v50
    %v331 = vadd.f32 %v329, %v50
    %v332 = vmax.f32 %v330, 0.0
    %v333 = vmax.f32 %v331, 0.0
    %334 = vrot.lane.b32.xlu0 %v332, 17
    %v335 = vpop.permute.xlu0 %334
    %336 = vrot.lane.b32.xlu0 %v333, 17
    %v337 = vpop.permute.xlu0 %336
    %v338 = vsel %vm62, %v335, %v337
    %v339 = vsel %vm62, %v337, %v335
    %v340 = vld [vmem:[%s4] sm:$0x3]
    %v342 = vlaneseq
    %v343 = vshrl.u32 %v342, 7
    %v344 = vsub.s32 0, %v343
    %v345 = vrot.slane %v340, %v344
    %v346 = vlaneseq
    %v347 = vshrl.u32 %v346, 7
    %v348 = vsub.s32 1, %v347
    %v349 = vrot.slane %v340, %v348
    %v352 = vmul.f32 %v339, %v345
    %v353 = vmul.f32 %v338, %v349
    %354 = vrot.lane.b32.xlu0 %v332, 16
    %v355 = vpop.permute.xlu0 %354
    %356 = vrot.lane.b32.xlu0 %v333, 16
    %v357 = vpop.permute.xlu0 %356
    %v358 = vsel %vm83, %v355, %v357
    %v359 = vsel %vm83, %v357, %v355
    %v360 = vld [vmem:[%s86] sm:$0x3]
    %v362 = vlaneseq
    %v363 = vshrl.u32 %v362, 7
    %v364 = vsub.s32 0, %v363
    %v365 = vrot.slane %v360, %v364
    %v366 = vlaneseq
    %v367 = vshrl.u32 %v366, 7
    %v368 = vsub.s32 1, %v367
    %v369 = vrot.slane %v360, %v368
    %v372 = vmul.f32 %v359, %v365
    %v373 = vmul.f32 %v358, %v369
    %374 = vrot.lane.b32.xlu0 %v332, 15
    %v375 = vpop.permute.xlu0 %374
    %376 = vrot.lane.b32.xlu0 %v333, 15
    %v377 = vpop.permute.xlu0 %376
    %v378 = vsel %vm105, %v375, %v377
    %v379 = vsel %vm105, %v377, %v375
    %v380 = vld [vmem:[%s108] sm:$0x3]
    %v382 = vlaneseq
    %v383 = vshrl.u32 %v382, 7
    %v384 = vsub.s32 0, %v383
    %v385 = vrot.slane %v380, %v384
    %v386 = vlaneseq
    %v387 = vshrl.u32 %v386, 7
    %v388 = vsub.s32 1, %v387
    %v389 = vrot.slane %v380, %v388
    %v392 = vmul.f32 %v379, %v385
    %v393 = vmul.f32 %v378, %v389
    %394 = vrot.lane.b32.xlu0 %v332, 1
    %v395 = vpop.permute.xlu0 %394
    %396 = vrot.lane.b32.xlu0 %v333, 1
    %v397 = vpop.permute.xlu0 %396
    %v398 = vsel %vm127, %v395, %v397
    %v399 = vsel %vm127, %v397, %v395
    %v400 = vld [vmem:[%s130] sm:$0x3]
    %v402 = vlaneseq
    %v403 = vshrl.u32 %v402, 7
    %v404 = vsub.s32 0, %v403
    %v405 = vrot.slane %v400, %v404
    %v406 = vlaneseq
    %v407 = vshrl.u32 %v406, 7
    %v408 = vsub.s32 1, %v407
    %v409 = vrot.slane %v400, %v408
    %v412 = vmul.f32 %v399, %v405
    %v413 = vmul.f32 %v398, %v409
    %v414 = vld [vmem:[%s145] sm:$0x3]
    %v416 = vlaneseq
    %v417 = vshrl.u32 %v416, 7
    %v418 = vsub.s32 0, %v417
    %v419 = vrot.slane %v414, %v418
    %v420 = vlaneseq
    %v421 = vshrl.u32 %v420, 7
    %v422 = vsub.s32 1, %v421
    %v423 = vrot.slane %v414, %v422
    %v426 = vmul.f32 %v332, %v419
    %v427 = vmul.f32 %v333, %v423
    %428 = vrot.lane.b32.xlu0 %v332, 127
    %v429 = vpop.permute.xlu0 %428
    %430 = vrot.lane.b32.xlu0 %v333, 127
    %v431 = vpop.permute.xlu0 %430
    %v432 = vsel %vm164, %v429, %v431
    %v433 = vsel %vm164, %v431, %v429
    %v434 = vld [vmem:[%s167] sm:$0x3]
    %v436 = vlaneseq
    %v437 = vshrl.u32 %v436, 7
    %v438 = vsub.s32 0, %v437
    %v439 = vrot.slane %v434, %v438
    %v440 = vlaneseq
    %v441 = vshrl.u32 %v440, 7
    %v442 = vsub.s32 1, %v441
    %v443 = vrot.slane %v434, %v442
    %v446 = vmul.f32 %v432, %v439
    %v447 = vmul.f32 %v433, %v443
    %448 = vrot.lane.b32.xlu0 %v332, 113
    %v449 = vpop.permute.xlu0 %448
    %450 = vrot.lane.b32.xlu0 %v333, 113
    %v451 = vpop.permute.xlu0 %450
    %v452 = vsel %vm186, %v449, %v451
    %v453 = vsel %vm186, %v451, %v449
    %v454 = vld [vmem:[%s189] sm:$0x3]
    %v456 = vlaneseq
    %v457 = vshrl.u32 %v456, 7
    %v458 = vsub.s32 0, %v457
    %v459 = vrot.slane %v454, %v458
    %v460 = vlaneseq
    %v461 = vshrl.u32 %v460, 7
    %v462 = vsub.s32 1, %v461
    %v463 = vrot.slane %v454, %v462
    %v466 = vmul.f32 %v452, %v459
    %v467 = vmul.f32 %v453, %v463
    %468 = vrot.lane.b32.xlu0 %v332, 112
    %v469 = vpop.permute.xlu0 %468
    %470 = vrot.lane.b32.xlu0 %v333, 112
    %v471 = vpop.permute.xlu0 %470
    %v472 = vsel %vm208, %v469, %v471
    %v473 = vsel %vm208, %v471, %v469
    %v474 = vld [vmem:[%s211] sm:$0x3]
    %v476 = vlaneseq
    %v477 = vshrl.u32 %v476, 7
    %v478 = vsub.s32 0, %v477
    %v479 = vrot.slane %v474, %v478
    %v480 = vlaneseq
    %v481 = vshrl.u32 %v480, 7
    %v482 = vsub.s32 1, %v481
    %v483 = vrot.slane %v474, %v482
    %v486 = vmul.f32 %v472, %v479
    %v487 = vmul.f32 %v473, %v483
    %488 = vrot.lane.b32.xlu0 %v332, 111
    %v489 = vpop.permute.xlu0 %488
    %490 = vrot.lane.b32.xlu0 %v333, 111
    %v491 = vpop.permute.xlu0 %490
    %v492 = vsel %vm230, %v489, %v491
    %v493 = vsel %vm230, %v491, %v489
    %v494 = vld [vmem:[%s233] sm:$0x3]
    %v496 = vlaneseq
    %v497 = vshrl.u32 %v496, 7
    %v498 = vsub.s32 0, %v497
    %v499 = vrot.slane %v494, %v498
    %v500 = vlaneseq
    %v501 = vshrl.u32 %v500, 7
    %v502 = vsub.s32 1, %v501
    %v503 = vrot.slane %v494, %v502
    %v506 = vmul.f32 %v492, %v499
    %v507 = vmul.f32 %v493, %v503
    %508 = vmatprep.subr.mxu0 %v353
    %509 = vmatpush1.msra.mxu0 %v352
    %510 = vmatprep.subr.mxu0 %v373
    %511 = vmatpush1.msra.mxu0 %v372
    %512 = vmatprep.subr.mxu0 %v393
    %513 = vmatpush1.msra.mxu0 %v392
    %514 = vmatprep.subr.mxu0 %v413
    %515 = vmatpush1.msra.mxu0 %v412
    %516 = vmatprep.subr.mxu0 %v427
    %517 = vmatpush1.msra.mxu0 %v426
    %518 = vmatprep.subr.mxu0 %v447
    %519 = vmatpush1.msra.mxu0 %v446
    %520 = vmatprep.subr.mxu0 %v467
    %521 = vmatpush1.msra.mxu0 %v466
    %522 = vmatprep.subr.mxu0 %v487
    %523 = vmatpush1.msra.mxu0 %v486
    %524 = vmatprep.subr.mxu0 %v507
    %525 = vmatpush1.msra.mxu0 %v506
    %526 = vmatprep.subr.mxu0 0.0
    %527 = vmatpush1.msra.mxu0 0.0
    %528 = vmatprep.subr.mxu0 0.0
    %529 = vmatpush1.msra.mxu0 0.0
    %530 = vmatprep.subr.mxu0 0.0
    %531 = vmatpush1.msra.mxu0 0.0
    %532 = vmatprep.subr.mxu0 0.0
    %533 = vmatpush1.msra.mxu0 0.0
    %534 = vmatprep.subr.mxu0 0.0
    %535 = vmatpush1.msra.mxu0 0.0
    %536 = vmatprep.subr.mxu0 0.0
    %537 = vmatpush1.msra.mxu0 0.0
    %538 = vmatprep.subr.mxu0 0.0
    %539 = vmatpush1.msra.mxu0 0.0
    %540 = vmatprep.subr.mxu0 0.0
    %541 = vmatpush1.msra.mxu0 0.0
    %542 = vmatprep.subr.mxu0 0.0
    %543 = vmatpush1.msra.mxu0 0.0
    %544 = vmatprep.subr.mxu0 0.0
    %545 = vmatpush1.msra.mxu0 0.0
    %546 = vmatprep.subr.mxu0 0.0
    %547 = vmatpush1.msra.mxu0 0.0
    %548 = vmatprep.subr.mxu0 0.0
    %549 = vmatpush1.msra.mxu0 0.0
    %550 = vmatprep.subr.mxu0 0.0
    %551 = vmatpush1.msra.mxu0 0.0
    %552 = vmatprep.subr.mxu0 0.0
    %553 = vmatpush1.msra.mxu0 0.0
    %554 = vmatprep.subr.mxu0 0.0
    %555 = vmatpush1.msra.mxu0 0.0
    %556 = vmatprep.subr.mxu0 0.0
    %557 = vmatpush1.msra.mxu0 0.0
    %558 = vmatprep.subr.mxu0 0.0
    %559 = vmatpush1.msra.mxu0 0.0
    %560 = vmatprep.subr.mxu0 0.0
    %561 = vmatpush1.msra.mxu0 0.0
    %562 = vmatprep.subr.mxu0 0.0
    %563 = vmatpush1.msra.mxu0 0.0
    %564 = vmatprep.subr.mxu0 0.0
    %565 = vmatpush1.msra.mxu0 0.0
    %566 = vmatprep.subr.mxu0 0.0
    %567 = vmatpush1.msra.mxu0 0.0
    %568 = vmatprep.subr.mxu0 0.0
    %569 = vmatpush1.msra.mxu0 0.0
    %570 = vmatprep.subr.mxu0 0.0
    %571 = vmatpush1.msra.mxu0 0.0
    %572 = vmatprep.mubr.f32.mxu0 0.0
    %573 = vmatmul.mubr.f32.gmra.mrb[0].mxu0 %v250
    %v574 = vpop.f32.mrb[0].mxu0
    %v575 = vadd.f32 0.0, %v574
    %v576 = vpop.f32.mrb[0].mxu0
    %v577 = vadd.f32 0.0, %v576
    %578 = vdwg.mxu0
    %s579 = scalar_lea.vmem [#allocation5], 16
    %580 = vst [vmem:[%s579] sm:$0xff] %v575
    %581 = vst [vmem:[%s579 + $0x8] sm:$0xff] %v577
    // Predicated region
    $region26: #{tpu_custom_call.1} parent=1 // pred_check
      _
    $region27: #{tpu_custom_call.1} parent=1 // pred_check_branch
      %583 = sbr.rel (0) target = $region29
    $region28: #{tpu_custom_call.1} parent=1 // pred_region
      %s585 = ssub.s32 512, 512
      %586 = vsyncadd [#allocation4], %s585
      %s587 = sshll.u32 [#allocation5], 4
      %s588 = int_to_ptr.vmem [resolvable:$true] %s587
      %593 = dma.vmem_to_hbm [thread:$0]  %s588, 512, %s5, [#allocation4], 256, 256, 16
    $region29: #{tpu_custom_call.1} parent=1 // pred_fallthru
      _
    // Predicated region
    $region30: #{tpu_custom_call.1} parent=1 // pred_check
      _
    $region31: #{tpu_custom_call.1} parent=1 // pred_check_branch
      %595 = sbr.rel (0) target = $region33
    $region32: #{tpu_custom_call.1} parent=1 // pred_region
      %596 = dma.done [#allocation4], 512
    $region33: #{tpu_custom_call.1} parent=1 // pred_fallthru
      _
    %597 = vsyncpa [#allocation3], 1
    %598 = vsyncpa [#allocation4], 1

</llo_original>
